<compile_context>
chip_gen: v7x
topology: tpu7x:2x2x1
jax: 0.10.0
libtpu: 0.0.40
codegen_flags: <defaults>
</compile_context>

<pallas_src>
import math

import jax
import jax.numpy as jnp
from jax.experimental import pallas as pl
from jax.experimental.pallas import tpu as pltpu


LANE = 128      # lane width of a vreg
SUBLANE = 8     # f32 sublane count


def _round_up(n, m):
    return ((n + m - 1) // m) * m


def decoder_layer_dims(output_dim, n_neurons):
    """Replicates the (in, out) dims of the PyTorch Decoder layer stack."""
    dims = []
    for i in range(len(n_neurons) - 1, -1, -1):
        n_in = n_neurons[i] if i == len(n_neurons) - 1 else n_neurons[i + 1]
        n_out = n_neurons[i]
        dims.append((n_in, n_out))
    dims.append((n_neurons[0], output_dim))
    return dims


def init_decoder_params(key, output_dim, n_neurons, dtype=jnp.float32):
    """PyTorch Linear default init: U(-1/sqrt(in), 1/sqrt(in)).

    Weights stored as (out_features, in_features) (same as nn.Linear),
    biases as (out_features, 1) so they broadcast over the batch lanes.
    """
    params = []
    for (n_in, n_out) in decoder_layer_dims(output_dim, n_neurons):
        key, wk, bk = jax.random.split(key, 3)
        bound = 1.0 / math.sqrt(n_in)
        w = jax.random.uniform(wk, (n_out, n_in), dtype, -bound, bound)
        b = jax.random.uniform(bk, (n_out, 1), dtype, -bound, bound)
        params.append((w, b))
    return params


def make_mlp_kernel(num_layers):
    """Fused kernel: refs = (x, w0, b0, w1, b1, ..., out).

    Activations are (features, batch_tile); every layer is h = W @ h + b with
    f32 MXU accumulation, ReLU on all but the last layer.
    """

    def kernel(*refs):
        x_ref = refs[0]            # (in_dim, tb)
        o_ref = refs[-1]           # (out_dim, tb)
        h = x_ref[...]
        for li in range(num_layers):
            w = refs[1 + 2 * li][...]   # (out_i, in_i)
            b = refs[2 + 2 * li][...]   # (out_i, 1) -> broadcasts over lanes
            h = jnp.dot(w, h, preferred_element_type=jnp.float32) + b
            if li < num_layers - 1:      # hidden layers use ReLU
                h = jnp.maximum(h, 0.0)
        o_ref[...] = h.astype(o_ref.dtype)

    return kernel


def _choose_batch_tile(batch, max_tile=1024):
    """Batch tile on the lane axis.

    * batch <= 128: a single full-dim block (legal even if not a lane
      multiple; masked store cost is irrelevant at this size).
    * otherwise: a multiple of 128 lanes, capped at `max_tile`, with the tile
      count forced to >= 2 (v7x megacore) and tiles evened out so the trailing
      partial block is not mostly padding.
    """
    if batch <= LANE:
        return batch
    max_tile = max(LANE, (max_tile // LANE) * LANE)
    num_tiles = max(2, pl.cdiv(batch, max_tile))
    return _round_up(pl.cdiv(batch, num_tiles), LANE)


def decoder_forward(x, params, *, max_batch_tile=1024):
    """Runs the fused, batch-tiled Decoder MLP as a single pallas_call."""
    num_layers = len(params)
    batch, in_dim = x.shape
    out_dim = params[-1][0].shape[0]

    # Transposed layout: batch on lanes, features on sublanes.
    x_t = x.T                               # (in_dim, batch)

    tb = _choose_batch_tile(batch, max_batch_tile)
    grid = (pl.cdiv(batch, tb),)

    flat_args = [x_t]
    in_specs = [pl.BlockSpec((in_dim, tb), lambda i: (0, i))]
    for (w, b) in params:
        flat_args.extend([w, b])
        # Constant index_map -> weights/biases stay VMEM-resident across steps.
        in_specs.append(pl.BlockSpec(w.shape, lambda i: (0, 0)))
        in_specs.append(pl.BlockSpec(b.shape, lambda i: (0, 0)))
    out_specs = pl.BlockSpec((out_dim, tb), lambda i: (0, i))

    # Scheduler hint for XLA, computed from true (unpadded) sizes.
    flops = 2 * batch * sum(w.shape[0] * w.shape[1] for (w, _) in params)
    bytes_accessed = 4 * (batch * in_dim + batch * out_dim
                          + sum(w.size + b.size for (w, b) in params))
    cost = pl.CostEstimate(flops=flops, transcendentals=0,
                           bytes_accessed=bytes_accessed)

    # Explicit VMEM budget: 2x params (in case Mosaic double-buffers them
    # despite the constant index_map) + double-buffered x/out tiles +
    # per-layer activation slabs (sublane-rounded) + margin.  Clamped to stay
    # inside v7x's 64 MiB physical VMEM.
    param_bytes = sum(4 * (w.size + b.size) for (w, b) in params)
    widths = [in_dim] + [w.shape[0] for (w, _) in params]
    act_bytes = sum(_round_up(wd, SUBLANE) for wd in widths) * tb * 4
    io_tile_bytes = 2 * (_round_up(in_dim, SUBLANE)
                         + _round_up(out_dim, SUBLANE)) * tb * 4
    vmem_limit = min(64 << 20,
                     _round_up(2 * param_bytes + io_tile_bytes + act_bytes
                               + (4 << 20), 1 << 20))

    out_t = pl.pallas_call(
        make_mlp_kernel(num_layers),
        out_shape=jax.ShapeDtypeStruct((out_dim, batch), x.dtype),
        grid=grid,
        in_specs=in_specs,
        out_specs=out_specs,
        compiler_params=pltpu.CompilerParams(
            dimension_semantics=("parallel",),
            vmem_limit_bytes=vmem_limit),
        cost_estimate=cost,
    )(*flat_args)

    # TODO(synk): optional bf16 storage/DMA path (f32 accumulation) for
    # v6e/v7x when the accuracy budget allows; kept f32 here for exactness.
    return out_t.T                           # back to (batch, out_dim)


def decoder_reference(x, params):
    """Plain-JAX reference (PyTorch semantics) for correctness checking."""
    h = x.astype(jnp.float32)
    for li, (w, b) in enumerate(params):
        h = h @ w.T.astype(jnp.float32) + b[:, 0].astype(jnp.float32)
        if li < len(params) - 1:
            h = jnp.maximum(h, 0.0)
    return h.astype(x.dtype)


if __name__ == "__main__":
    # Shapes consistent with the module: latent -> hidden stack -> output.
    output_dim = 20
    n_neurons = [32, 16, 8]          # encoder hidden widths; decoder reverses them
    latent_dim = n_neurons[-1]       # decoder input size = 8

    key = jax.random.PRNGKey(0)
    key, xk_small, xk_big = jax.random.split(key, 3)
    params = init_decoder_params(key, output_dim, n_neurons)

    # Case 1: tiny batch (single full-dim block).
    x_small = jax.random.normal(xk_small, (4, latent_dim), jnp.float32)
    out_small = jax.block_until_ready(decoder_forward(x_small, params))
    ref_small = decoder_reference(x_small, params)
    assert out_small.shape == (4, output_dim), out_small.shape
    assert jnp.allclose(out_small, ref_small, atol=1e-5, rtol=1e-5), \
        "small-batch mismatch vs reference"

    # Case 2: larger batch -> 2 grid steps (128-lane tiles, partial last tile).
    x_big = jax.random.normal(xk_big, (300, latent_dim), jnp.float32)
    out_big = jax.block_until_ready(decoder_forward(x_big, params))
    ref_big = decoder_reference(x_big, params)
    assert out_big.shape == (300, output_dim), out_big.shape
    assert jnp.allclose(out_big, ref_big, atol=1e-5, rtol=1e-5), \
        "batched mismatch vs reference"

    print("KERNEL_OK")
</pallas_src>

<mosaic_0001>
module attributes {stable_mosaic.version = 11 : i64} {
  func.func @kernel(%arg0: i32, %arg1: memref<8x4xf32, #tpu.memory_space<vmem>>, %arg2: memref<8x8xf32, #tpu.memory_space<vmem>>, %arg3: memref<8x1xf32, #tpu.memory_space<vmem>>, %arg4: memref<16x8xf32, #tpu.memory_space<vmem>>, %arg5: memref<16x1xf32, #tpu.memory_space<vmem>>, %arg6: memref<32x16xf32, #tpu.memory_space<vmem>>, %arg7: memref<32x1xf32, #tpu.memory_space<vmem>>, %arg8: memref<20x32xf32, #tpu.memory_space<vmem>>, %arg9: memref<20x1xf32, #tpu.memory_space<vmem>>, %arg10: memref<20x4xf32, #tpu.memory_space<vmem>>) attributes {dimension_semantics = [#tpu.dimension_semantics<parallel>], iteration_bounds = array<i64: 1>, scalar_prefetch = 0 : i64, scratch_operands = 0 : i64, tpu.core_type = #tpu.core_type<tc>, window_params = [{transform_indices = @transform_0, window_bounds = array<i64: 8, 4>}, {pipeline_mode = #tpu.pipeline_mode<synchronous>, transform_indices = @transform_1, window_bounds = array<i64: 8, 8>}, {pipeline_mode = #tpu.pipeline_mode<synchronous>, transform_indices = @transform_2, window_bounds = array<i64: 8, 1>}, {pipeline_mode = #tpu.pipeline_mode<synchronous>, transform_indices = @transform_3, window_bounds = array<i64: 16, 8>}, {pipeline_mode = #tpu.pipeline_mode<synchronous>, transform_indices = @transform_4, window_bounds = array<i64: 16, 1>}, {pipeline_mode = #tpu.pipeline_mode<synchronous>, transform_indices = @transform_5, window_bounds = array<i64: 32, 16>}, {pipeline_mode = #tpu.pipeline_mode<synchronous>, transform_indices = @transform_6, window_bounds = array<i64: 32, 1>}, {pipeline_mode = #tpu.pipeline_mode<synchronous>, transform_indices = @transform_7, window_bounds = array<i64: 20, 32>}, {pipeline_mode = #tpu.pipeline_mode<synchronous>, transform_indices = @transform_8, window_bounds = array<i64: 20, 1>}, {transform_indices = @transform_9, window_bounds = array<i64: 20, 4>}]} {
    %c0 = arith.constant 0 : index
    %c0_0 = arith.constant 0 : index
    %0 = vector.load %arg1[%c0, %c0_0] : memref<8x4xf32, #tpu.memory_space<vmem>>, vector<8x4xf32>
    %c0_1 = arith.constant 0 : index
    %c0_2 = arith.constant 0 : index
    %1 = vector.load %arg2[%c0_1, %c0_2] : memref<8x8xf32, #tpu.memory_space<vmem>>, vector<8x8xf32>
    %c0_3 = arith.constant 0 : index
    %c0_4 = arith.constant 0 : index
    %2 = vector.load %arg3[%c0_3, %c0_4] : memref<8x1xf32, #tpu.memory_space<vmem>>, vector<8x1xf32>
    %cst = arith.constant dense<0.000000e+00> : vector<8x4xf32>
    %3 = tpu.matmul %1, %0, %cst {dimension_numbers = #tpu.dot_dimension_numbers<[1], [0], [0], [1], [0, 0, 1, 1], [], []>} : vector<8x8xf32>, vector<8x4xf32>, vector<8x4xf32> -> vector<8x4xf32>
    %4 = vector.broadcast %2 : vector<8x1xf32> to vector<8x4xf32>
    %5 = arith.addf %3, %4 : vector<8x4xf32>
    %cst_5 = arith.constant 0.000000e+00 : f32
    %6 = vector.broadcast %cst_5 : f32 to vector<8x4xf32>
    %7 = arith.maximumf %5, %6 : vector<8x4xf32>
    %c0_6 = arith.constant 0 : index
    %c0_7 = arith.constant 0 : index
    %8 = vector.load %arg4[%c0_6, %c0_7] : memref<16x8xf32, #tpu.memory_space<vmem>>, vector<16x8xf32>
    %c0_8 = arith.constant 0 : index
    %c0_9 = arith.constant 0 : index
    %9 = vector.load %arg5[%c0_8, %c0_9] : memref<16x1xf32, #tpu.memory_space<vmem>>, vector<16x1xf32>
    %cst_10 = arith.constant dense<0.000000e+00> : vector<16x4xf32>
    %10 = tpu.matmul %8, %7, %cst_10 {dimension_numbers = #tpu.dot_dimension_numbers<[1], [0], [0], [1], [0, 0, 1, 1], [], []>} : vector<16x8xf32>, vector<8x4xf32>, vector<16x4xf32> -> vector<16x4xf32>
    %11 = vector.broadcast %9 : vector<16x1xf32> to vector<16x4xf32>
    %12 = arith.addf %10, %11 : vector<16x4xf32>
    %cst_11 = arith.constant 0.000000e+00 : f32
    %13 = vector.broadcast %cst_11 : f32 to vector<16x4xf32>
    %14 = arith.maximumf %12, %13 : vector<16x4xf32>
    %c0_12 = arith.constant 0 : index
    %c0_13 = arith.constant 0 : index
    %15 = vector.load %arg6[%c0_12, %c0_13] : memref<32x16xf32, #tpu.memory_space<vmem>>, vector<32x16xf32>
    %c0_14 = arith.constant 0 : index
    %c0_15 = arith.constant 0 : index
    %16 = vector.load %arg7[%c0_14, %c0_15] : memref<32x1xf32, #tpu.memory_space<vmem>>, vector<32x1xf32>
    %cst_16 = arith.constant dense<0.000000e+00> : vector<32x4xf32>
    %17 = tpu.matmul %15, %14, %cst_16 {dimension_numbers = #tpu.dot_dimension_numbers<[1], [0], [0], [1], [0, 0, 1, 1], [], []>} : vector<32x16xf32>, vector<16x4xf32>, vector<32x4xf32> -> vector<32x4xf32>
    %18 = vector.broadcast %16 : vector<32x1xf32> to vector<32x4xf32>
    %19 = arith.addf %17, %18 : vector<32x4xf32>
    %cst_17 = arith.constant 0.000000e+00 : f32
    %20 = vector.broadcast %cst_17 : f32 to vector<32x4xf32>
    %21 = arith.maximumf %19, %20 : vector<32x4xf32>
    %c0_18 = arith.constant 0 : index
    %c0_19 = arith.constant 0 : index
    %22 = vector.load %arg8[%c0_18, %c0_19] : memref<20x32xf32, #tpu.memory_space<vmem>>, vector<20x32xf32>
    %c0_20 = arith.constant 0 : index
    %c0_21 = arith.constant 0 : index
    %23 = vector.load %arg9[%c0_20, %c0_21] : memref<20x1xf32, #tpu.memory_space<vmem>>, vector<20x1xf32>
    %cst_22 = arith.constant dense<0.000000e+00> : vector<20x4xf32>
    %24 = tpu.matmul %22, %21, %cst_22 {dimension_numbers = #tpu.dot_dimension_numbers<[1], [0], [0], [1], [0, 0, 1, 1], [], []>} : vector<20x32xf32>, vector<32x4xf32>, vector<20x4xf32> -> vector<20x4xf32>
    %25 = vector.broadcast %23 : vector<20x1xf32> to vector<20x4xf32>
    %26 = arith.addf %24, %25 : vector<20x4xf32>
    %c0_23 = arith.constant 0 : index
    %c0_24 = arith.constant 0 : index
    %27 = vector.load %arg10[%c0_23, %c0_24] : memref<20x4xf32, #tpu.memory_space<vmem>>, vector<20x4xf32>
    tpu.vector_store %arg10[%c0_23, %c0_24], %26 {strides = array<i32>} : memref<20x4xf32, #tpu.memory_space<vmem>>, vector<20x4xf32>,
    return
  }
  func.func @transform_0(%arg0: i32) -> (i32, i32) {
    %c0_i32 = arith.constant 0 : i32
    %c0_i32_0 = arith.constant 0 : i32
    return %c0_i32, %arg0 : i32, i32
  }
  func.func @transform_1(%arg0: i32) -> (i32, i32) {
    %c0_i32 = arith.constant 0 : i32
    %c0_i32_0 = arith.constant 0 : i32
    %c0_i32_1 = arith.constant 0 : i32
    return %c0_i32, %c0_i32_0 : i32, i32
  }
  func.func @transform_2(%arg0: i32) -> (i32, i32) {
    %c0_i32 = arith.constant 0 : i32
    %c0_i32_0 = arith.constant 0 : i32
    %c0_i32_1 = arith.constant 0 : i32
    return %c0_i32, %c0_i32_0 : i32, i32
  }
  func.func @transform_3(%arg0: i32) -> (i32, i32) {
    %c0_i32 = arith.constant 0 : i32
    %c0_i32_0 = arith.constant 0 : i32
    %c0_i32_1 = arith.constant 0 : i32
    return %c0_i32, %c0_i32_0 : i32, i32
  }
  func.func @transform_4(%arg0: i32) -> (i32, i32) {
    %c0_i32 = arith.constant 0 : i32
    %c0_i32_0 = arith.constant 0 : i32
    %c0_i32_1 = arith.constant 0 : i32
    return %c0_i32, %c0_i32_0 : i32, i32
  }
  func.func @transform_5(%arg0: i32) -> (i32, i32) {
    %c0_i32 = arith.constant 0 : i32
    %c0_i32_0 = arith.constant 0 : i32
    %c0_i32_1 = arith.constant 0 : i32
    return %c0_i32, %c0_i32_0 : i32, i32
  }
  func.func @transform_6(%arg0: i32) -> (i32, i32) {
    %c0_i32 = arith.constant 0 : i32
    %c0_i32_0 = arith.constant 0 : i32
    %c0_i32_1 = arith.constant 0 : i32
    return %c0_i32, %c0_i32_0 : i32, i32
  }
  func.func @transform_7(%arg0: i32) -> (i32, i32) {
    %c0_i32 = arith.constant 0 : i32
    %c0_i32_0 = arith.constant 0 : i32
    %c0_i32_1 = arith.constant 0 : i32
    return %c0_i32, %c0_i32_0 : i32, i32
  }
  func.func @transform_8(%arg0: i32) -> (i32, i32) {
    %c0_i32 = arith.constant 0 : i32
    %c0_i32_0 = arith.constant 0 : i32
    %c0_i32_1 = arith.constant 0 : i32
    return %c0_i32, %c0_i32_0 : i32, i32
  }
  func.func @transform_9(%arg0: i32) -> (i32, i32) {
    %c0_i32 = arith.constant 0 : i32
    %c0_i32_0 = arith.constant 0 : i32
    return %c0_i32, %arg0 : i32, i32
  }
}

</mosaic_0001>

<llo_original>
// kernel: tpu_custom_call.1
$region0: #{tpu_custom_call.1}
  #allocation0 [shape = 'u32[]', space=smem, size = 0x4, offset = 0x4, fixed_abs, tag = 'smem constant byte address 0x4 - core index']
  #allocation1 [shape = 'u32[144,128]{1,0:T(1,128)}', space=vmem, size = 0x12000, scoped, tag = 'internal scratch']
  %s0 = inlined_call_operand.vmem [shape: f32[8,4], index: 0, kind: input, shape index: {}]
  %s1 = inlined_call_operand.vmem [shape: f32[8,8], index: 1, kind: input, shape index: {}]
  %s2 = inlined_call_operand.vmem [shape: f32[8,1], index: 2, kind: input, shape index: {}]
  %s3 = inlined_call_operand.vmem [shape: f32[16,8], index: 3, kind: input, shape index: {}]
  %s4 = inlined_call_operand.vmem [shape: f32[16,1], index: 4, kind: input, shape index: {}]
  %s5 = inlined_call_operand.vmem [shape: f32[32,16], index: 5, kind: input, shape index: {}]
  %s6 = inlined_call_operand.vmem [shape: f32[32,1], index: 6, kind: input, shape index: {}]
  %s7 = inlined_call_operand.vmem [shape: f32[20,32], index: 7, kind: input, shape index: {}]
  %s8 = inlined_call_operand.vmem [shape: f32[20,1], index: 8, kind: input, shape index: {}]
  %s9 = inlined_call_operand.vmem [shape: f32[20,4], index: 9, kind: output, shape index: {}]
  %s10 = sld [smem:[#allocation0]]
  $region46: #{tpu_custom_call.1} parent=0
    _
  %s12 = ssub.s32 1, %s10
  %s13 = scalar_select 0, %s12, %s10
  // Predicated region
  $region2: #{tpu_custom_call.1} parent=0 // pred_check
    _
  $region3: #{tpu_custom_call.1} parent=0 // pred_check_branch
    %15 = sbr.rel (0) target = $region5
  $region4: #{tpu_custom_call.1} parent=0 // pred_region
    _
  $region5: #{tpu_custom_call.1} parent=0 // pred_fallthru
    _
  // Predicated region
  $region6: #{tpu_custom_call.1} parent=0 // pred_check
    _
  $region7: #{tpu_custom_call.1} parent=0 // pred_check_branch
    %17 = sbr.rel (0) target = $region9
  $region8: #{tpu_custom_call.1} parent=0 // pred_region
    _
  $region9: #{tpu_custom_call.1} parent=0 // pred_fallthru
    _
  // Predicated region
  $region10: #{tpu_custom_call.1} parent=0 // pred_check
    _
  $region11: #{tpu_custom_call.1} parent=0 // pred_check_branch
    %19 = sbr.rel (0) target = $region13
  $region12: #{tpu_custom_call.1} parent=0 // pred_region
    _
  $region13: #{tpu_custom_call.1} parent=0 // pred_fallthru
    _
  // Predicated region
  $region14: #{tpu_custom_call.1} parent=0 // pred_check
    _
  $region15: #{tpu_custom_call.1} parent=0 // pred_check_branch
    %21 = sbr.rel (0) target = $region17
  $region16: #{tpu_custom_call.1} parent=0 // pred_region
    _
  $region17: #{tpu_custom_call.1} parent=0 // pred_fallthru
    _
  // Predicated region
  $region18: #{tpu_custom_call.1} parent=0 // pred_check
    _
  $region19: #{tpu_custom_call.1} parent=0 // pred_check_branch
    %23 = sbr.rel (0) target = $region21
  $region20: #{tpu_custom_call.1} parent=0 // pred_region
    _
  $region21: #{tpu_custom_call.1} parent=0 // pred_fallthru
    _
  // Predicated region
  $region22: #{tpu_custom_call.1} parent=0 // pred_check
    _
  $region23: #{tpu_custom_call.1} parent=0 // pred_check_branch
    %25 = sbr.rel (0) target = $region25
  $region24: #{tpu_custom_call.1} parent=0 // pred_region
    _
  $region25: #{tpu_custom_call.1} parent=0 // pred_fallthru
    _
  // Predicated region
  $region26: #{tpu_custom_call.1} parent=0 // pred_check
    _
  $region27: #{tpu_custom_call.1} parent=0 // pred_check_branch
    %27 = sbr.rel (0) target = $region29
  $region28: #{tpu_custom_call.1} parent=0 // pred_region
    _
  $region29: #{tpu_custom_call.1} parent=0 // pred_fallthru
    _
  // Predicated region
  $region30: #{tpu_custom_call.1} parent=0 // pred_check
    _
  $region31: #{tpu_custom_call.1} parent=0 // pred_check_branch
    %29 = sbr.rel (0) target = $region33
  $region32: #{tpu_custom_call.1} parent=0 // pred_region
    _
  $region33: #{tpu_custom_call.1} parent=0 // pred_fallthru
    _
  // Predicated region
  $region34: #{tpu_custom_call.1} parent=0 // pred_check
    _
  $region35: #{tpu_custom_call.1} parent=0 // pred_check_branch
    %31 = sbr.rel (0) target = $region37
  $region36: #{tpu_custom_call.1} parent=0 // pred_region
    _
  $region37: #{tpu_custom_call.1} parent=0 // pred_fallthru
    _
  %v32 = vld [vmem:[%s0] sm:$0xff]
  %v33 = vld [vmem:[%s1] sm:$0xff]
  %v34 = vld [vmem:[%s2] sm:$0xff]
  %36 = vset.pattern.permute.xlu0 0
  %37 = vperm.xlu0 %36, %v34
  %v38 = vpop.permute.xlu0 %37
  %vm40 = vcmask 64512
  %v42 = vsel %vm40, %v33, 0
  %44 = vmatprep.subr.mxu0 0.0
  %45 = vmatpush1.msra.mxu0 %v32
  %46 = vmatprep.subr.mxu0 0.0
  %47 = vmatpush1.msra.mxu0 0.0
  %48 = vmatprep.subr.mxu0 0.0
  %49 = vmatpush1.msra.mxu0 0.0
  %50 = vmatprep.subr.mxu0 0.0
  %51 = vmatpush1.msra.mxu0 0.0
  %52 = vmatprep.subr.mxu0 0.0
  %53 = vmatpush1.msra.mxu0 0.0
  %54 = vmatprep.subr.mxu0 0.0
  %55 = vmatpush1.msra.mxu0 0.0
  %56 = vmatprep.subr.mxu0 0.0
  %57 = vmatpush1.msra.mxu0 0.0
  %58 = vmatprep.subr.mxu0 0.0
  %59 = vmatpush1.msra.mxu0 0.0
  %60 = vmatprep.subr.mxu0 0.0
  %61 = vmatpush1.msra.mxu0 0.0
  %62 = vmatprep.subr.mxu0 0.0
  %63 = vmatpush1.msra.mxu0 0.0
  %64 = vmatprep.subr.mxu0 0.0
  %65 = vmatpush1.msra.mxu0 0.0
  %66 = vmatprep.subr.mxu0 0.0
  %67 = vmatpush1.msra.mxu0 0.0
  %68 = vmatprep.subr.mxu0 0.0
  %69 = vmatpush1.msra.mxu0 0.0
  %70 = vmatprep.subr.mxu0 0.0
  %71 = vmatpush1.msra.mxu0 0.0
  %72 = vmatprep.subr.mxu0 0.0
  %73 = vmatpush1.msra.mxu0 0.0
  %74 = vmatprep.subr.mxu0 0.0
  %75 = vmatpush1.msra.mxu0 0.0
  %76 = vmatprep.subr.mxu0 0.0
  %77 = vmatpush1.msra.mxu0 0.0
  %78 = vmatprep.subr.mxu0 0.0
  %79 = vmatpush1.msra.mxu0 0.0
  %80 = vmatprep.subr.mxu0 0.0
  %81 = vmatpush1.msra.mxu0 0.0
  %82 = vmatprep.subr.mxu0 0.0
  %83 = vmatpush1.msra.mxu0 0.0
  %84 = vmatprep.subr.mxu0 0.0
  %85 = vmatpush1.msra.mxu0 0.0
  %86 = vmatprep.subr.mxu0 0.0
  %87 = vmatpush1.msra.mxu0 0.0
  %88 = vmatprep.subr.mxu0 0.0
  %89 = vmatpush1.msra.mxu0 0.0
  %90 = vmatprep.subr.mxu0 0.0
  %91 = vmatpush1.msra.mxu0 0.0
  %92 = vmatprep.subr.mxu0 0.0
  %93 = vmatpush1.msra.mxu0 0.0
  %94 = vmatprep.subr.mxu0 0.0
  %95 = vmatpush1.msra.mxu0 0.0
  %96 = vmatprep.subr.mxu0 0.0
  %97 = vmatpush1.msra.mxu0 0.0
  %98 = vmatprep.subr.mxu0 0.0
  %99 = vmatpush1.msra.mxu0 0.0
  %100 = vmatprep.subr.mxu0 0.0
  %101 = vmatpush1.msra.mxu0 0.0
  %102 = vmatprep.subr.mxu0 0.0
  %103 = vmatpush1.msra.mxu0 0.0
  %104 = vmatprep.subr.mxu0 0.0
  %105 = vmatpush1.msra.mxu0 0.0
  %106 = vmatprep.subr.mxu0 0.0
  %107 = vmatpush1.msra.mxu0 0.0
  %108 = vmatprep.mubr.f32.mxu0 0.0
  %109 = vmatmul.mubr.f32.gmra.mrb[0].mxu0 %v42
  %v110 = vpop.f32.mrb[0].mxu0
  %v111 = vadd.f32 %v38, %v110
  %v112 = vpop.f32.mrb[0].mxu0
  %113 = vdwg.mxu0
  %v114 = vmax.f32 %v111, 0.0
  %v115 = vld [vmem:[%s3] sm:$0xff]
  %v116 = vld [vmem:[%s3 + $0x8] sm:$0xff]
  %v117 = vld [vmem:[%s4] sm:$0xff]
  %v118 = vld [vmem:[%s4 + $0x8] sm:$0xff]
  %120 = vset.pattern.permute.xlu0 0
  %121 = vperm.xlu0 %120, %v117
  %v122 = vpop.permute.xlu0 %121
  %125 = vset.pattern.permute.xlu0 0
  %126 = vperm.xlu0 %125, %v118
  %v127 = vpop.permute.xlu0 %126
  %v130 = vsel %vm40, %v115, 0
  %v133 = vsel %vm40, %v116, 0
  %135 = vmatprep.subr.mxu0 0.0
  %136 = vmatpush1.msra.mxu0 %v114
  %137 = vmatprep.subr.mxu0 0.0
  %138 = vmatpush1.msra.mxu0 0.0
  %139 = vmatprep.subr.mxu0 0.0
  %140 = vmatpush1.msra.mxu0 0.0
  %141 = vmatprep.subr.mxu0 0.0
  %142 = vmatpush1.msra.mxu0 0.0
  %143 = vmatprep.subr.mxu0 0.0
  %144 = vmatpush1.msra.mxu0 0.0
  %145 = vmatprep.subr.mxu0 0.0
  %146 = vmatpush1.msra.mxu0 0.0
  %147 = vmatprep.subr.mxu0 0.0
  %148 = vmatpush1.msra.mxu0 0.0
  %149 = vmatprep.subr.mxu0 0.0
  %150 = vmatpush1.msra.mxu0 0.0
  %151 = vmatprep.subr.mxu0 0.0
  %152 = vmatpush1.msra.mxu0 0.0
  %153 = vmatprep.subr.mxu0 0.0
  %154 = vmatpush1.msra.mxu0 0.0
  %155 = vmatprep.subr.mxu0 0.0
  %156 = vmatpush1.msra.mxu0 0.0
  %157 = vmatprep.subr.mxu0 0.0
  %158 = vmatpush1.msra.mxu0 0.0
  %159 = vmatprep.subr.mxu0 0.0
  %160 = vmatpush1.msra.mxu0 0.0
  %161 = vmatprep.subr.mxu0 0.0
  %162 = vmatpush1.msra.mxu0 0.0
  %163 = vmatprep.subr.mxu0 0.0
  %164 = vmatpush1.msra.mxu0 0.0
  %165 = vmatprep.subr.mxu0 0.0
  %166 = vmatpush1.msra.mxu0 0.0
  %167 = vmatprep.subr.mxu0 0.0
  %168 = vmatpush1.msra.mxu0 0.0
  %169 = vmatprep.subr.mxu0 0.0
  %170 = vmatpush1.msra.mxu0 0.0
  %171 = vmatprep.subr.mxu0 0.0
  %172 = vmatpush1.msra.mxu0 0.0
  %173 = vmatprep.subr.mxu0 0.0
  %174 = vmatpush1.msra.mxu0 0.0
  %175 = vmatprep.subr.mxu0 0.0
  %176 = vmatpush1.msra.mxu0 0.0
  %177 = vmatprep.subr.mxu0 0.0
  %178 = vmatpush1.msra.mxu0 0.0
  %179 = vmatprep.subr.mxu0 0.0
  %180 = vmatpush1.msra.mxu0 0.0
  %181 = vmatprep.subr.mxu0 0.0
  %182 = vmatpush1.msra.mxu0 0.0
  %183 = vmatprep.subr.mxu0 0.0
  %184 = vmatpush1.msra.mxu0 0.0
  %185 = vmatprep.subr.mxu0 0.0
  %186 = vmatpush1.msra.mxu0 0.0
  %187 = vmatprep.subr.mxu0 0.0
  %188 = vmatpush1.msra.mxu0 0.0
  %189 = vmatprep.subr.mxu0 0.0
  %190 = vmatpush1.msra.mxu0 0.0
  %191 = vmatprep.subr.mxu0 0.0
  %192 = vmatpush1.msra.mxu0 0.0
  %193 = vmatprep.subr.mxu0 0.0
  %194 = vmatpush1.msra.mxu0 0.0
  %195 = vmatprep.subr.mxu0 0.0
  %196 = vmatpush1.msra.mxu0 0.0
  %197 = vmatprep.subr.mxu0 0.0
  %198 = vmatpush1.msra.mxu0 0.0
  %199 = vmatprep.mubr.f32.mxu0 0.0
  %200 = vmatmul.mubr.f32.gmra.mrb[0].mxu0 %v130
  %v201 = vpop.f32.mrb[0].mxu0
  %v202 = vadd.f32 %v122, %v201
  %v203 = vpop.f32.mrb[0].mxu0
  %204 = vmatprep.mubr.f32.mxu0 0.0
  %205 = vmatmul.mubr.f32.gmra.mrb[0].mxu0 %v133
  %v206 = vpop.f32.mrb[0].mxu0
  %v207 = vadd.f32 %v127, %v206
  %v208 = vpop.f32.mrb[0].mxu0
  %209 = vdwg.mxu0
  %v210 = vmax.f32 %v202, 0.0
  %v211 = vmax.f32 %v207, 0.0
  %v212 = vld [vmem:[%s5] sm:$0xff]
  %v213 = vld [vmem:[%s5 + $0x8] sm:$0xff]
  %v214 = vld [vmem:[%s5 + $0x10] sm:$0xff]
  %v215 = vld [vmem:[%s5 + $0x18] sm:$0xff]
  %v216 = vld [vmem:[%s6] sm:$0xff]
  %v217 = vld [vmem:[%s6 + $0x8] sm:$0xff]
  %v218 = vld [vmem:[%s6 + $0x10] sm:$0xff]
  %v219 = vld [vmem:[%s6 + $0x18] sm:$0xff]
  %221 = vset.pattern.permute.xlu0 0
  %222 = vperm.xlu0 %221, %v216
  %v223 = vpop.permute.xlu0 %222
  %226 = vset.pattern.permute.xlu0 0
  %227 = vperm.xlu0 %226, %v217
  %v228 = vpop.permute.xlu0 %227
  %231 = vset.pattern.permute.xlu0 0
  %232 = vperm.xlu0 %231, %v218
  %v233 = vpop.permute.xlu0 %232
  %236 = vset.pattern.permute.xlu0 0
  %237 = vperm.xlu0 %236, %v219
  %v238 = vpop.permute.xlu0 %237
  %vm240 = vcmask 130048
  %v242 = vsel %vm240, %v212, 0
  %v245 = vsel %vm240, %v213, 0
  %v248 = vsel %vm240, %v214, 0
  %v251 = vsel %vm240, %v215, 0
  %253 = vmatprep.subr.mxu0 0.0
  %254 = vmatpush1.msra.mxu0 %v210
  %255 = vmatprep.subr.mxu0 0.0
  %256 = vmatpush1.msra.mxu0 %v211
  %257 = vmatprep.subr.mxu0 0.0
  %258 = vmatpush1.msra.mxu0 0.0
  %259 = vmatprep.subr.mxu0 0.0
  %260 = vmatpush1.msra.mxu0 0.0
  %261 = vmatprep.subr.mxu0 0.0
  %262 = vmatpush1.msra.mxu0 0.0
  %263 = vmatprep.subr.mxu0 0.0
  %264 = vmatpush1.msra.mxu0 0.0
  %265 = vmatprep.subr.mxu0 0.0
  %266 = vmatpush1.msra.mxu0 0.0
  %267 = vmatprep.subr.mxu0 0.0
  %268 = vmatpush1.msra.mxu0 0.0
  %269 = vmatprep.subr.mxu0 0.0
  %270 = vmatpush1.msra.mxu0 0.0
  %271 = vmatprep.subr.mxu0 0.0
  %272 = vmatpush1.msra.mxu0 0.0
  %273 = vmatprep.subr.mxu0 0.0
  %274 = vmatpush1.msra.mxu0 0.0
  %275 = vmatprep.subr.mxu0 0.0
  %276 = vmatpush1.msra.mxu0 0.0
  %277 = vmatprep.subr.mxu0 0.0
  %278 = vmatpush1.msra.mxu0 0.0
  %279 = vmatprep.subr.mxu0 0.0
  %280 = vmatpush1.msra.mxu0 0.0
  %281 = vmatprep.subr.mxu0 0.0
  %282 = vmatpush1.msra.mxu0 0.0
  %283 = vmatprep.subr.mxu0 0.0
  %284 = vmatpush1.msra.mxu0 0.0
  %285 = vmatprep.subr.mxu0 0.0
  %286 = vmatpush1.msra.mxu0 0.0
  %287 = vmatprep.subr.mxu0 0.0
  %288 = vmatpush1.msra.mxu0 0.0
  %289 = vmatprep.subr.mxu0 0.0
  %290 = vmatpush1.msra.mxu0 0.0
  %291 = vmatprep.subr.mxu0 0.0
  %292 = vmatpush1.msra.mxu0 0.0
  %293 = vmatprep.subr.mxu0 0.0
  %294 = vmatpush1.msra.mxu0 0.0
  %295 = vmatprep.subr.mxu0 0.0
  %296 = vmatpush1.msra.mxu0 0.0
  %297 = vmatprep.subr.mxu0 0.0
  %298 = vmatpush1.msra.mxu0 0.0
  %299 = vmatprep.subr.mxu0 0.0
  %300 = vmatpush1.msra.mxu0 0.0
  %301 = vmatprep.subr.mxu0 0.0
  %302 = vmatpush1.msra.mxu0 0.0
  %303 = vmatprep.subr.mxu0 0.0
  %304 = vmatpush1.msra.mxu0 0.0
  %305 = vmatprep.subr.mxu0 0.0
  %306 = vmatpush1.msra.mxu0 0.0
  %307 = vmatprep.subr.mxu0 0.0
  %308 = vmatpush1.msra.mxu0 0.0
  %309 = vmatprep.subr.mxu0 0.0
  %310 = vmatpush1.msra.mxu0 0.0
  %311 = vmatprep.subr.mxu0 0.0
  %312 = vmatpush1.msra.mxu0 0.0
  %313 = vmatprep.subr.mxu0 0.0
  %314 = vmatpush1.msra.mxu0 0.0
  %315 = vmatprep.subr.mxu0 0.0
  %316 = vmatpush1.msra.mxu0 0.0
  %317 = vmatprep.mubr.f32.mxu0 0.0
  %318 = vmatmul.mubr.f32.gmra.mrb[0].mxu0 %v242
  %v319 = vpop.f32.mrb[0].mxu0
  %v320 = vadd.f32 %v223, %v319
  %v321 = vpop.f32.mrb[0].mxu0
  %322 = vmatprep.mubr.f32.mxu0 0.0
  %323 = vmatmul.mubr.f32.gmra.mrb[0].mxu0 %v245
  %v324 = vpop.f32.mrb[0].mxu0
  %v325 = vadd.f32 %v228, %v324
  %v326 = vpop.f32.mrb[0].mxu0
  %327 = vmatprep.mubr.f32.mxu0 0.0
  %328 = vmatmul.mubr.f32.gmra.mrb[0].mxu0 %v248
  %v329 = vpop.f32.mrb[0].mxu0
  %v330 = vadd.f32 %v233, %v329
  %v331 = vpop.f32.mrb[0].mxu0
  %332 = vmatprep.mubr.f32.mxu0 0.0
  %333 = vmatmul.mubr.f32.gmra.mrb[0].mxu0 %v251
  %v334 = vpop.f32.mrb[0].mxu0
  %v335 = vadd.f32 %v238, %v334
  %v336 = vpop.f32.mrb[0].mxu0
  %337 = vdwg.mxu0
  %v338 = vmax.f32 %v320, 0.0
  %v339 = vmax.f32 %v325, 0.0
  %v340 = vmax.f32 %v330, 0.0
  %v341 = vmax.f32 %v335, 0.0
  %v342 = vld [vmem:[%s7] sm:$0xff]
  %v343 = vld [vmem:[%s7 + $0x8] sm:$0xff]
  %v344 = vld [vmem:[%s7 + $0x10] sm:$0xf]
  %v345 = vld [vmem:[%s8] sm:$0xff]
  %v346 = vld [vmem:[%s8 + $0x8] sm:$0xff]
  %v347 = vld [vmem:[%s8 + $0x10] sm:$0xf]
  %349 = vset.pattern.permute.xlu0 0
  %350 = vperm.xlu0 %349, %v345
  %v351 = vpop.permute.xlu0 %350
  %354 = vset.pattern.permute.xlu0 0
  %355 = vperm.xlu0 %354, %v346
  %v356 = vpop.permute.xlu0 %355
  %359 = vset.pattern.permute.xlu0 0
  %360 = vperm.xlu0 %359, %v347
  %v361 = vpop.permute.xlu0 %360
  %vm363 = vcmask 261120
  %v365 = vsel %vm363, %v342, 0
  %v368 = vsel %vm363, %v343, 0
  %v371 = vsel %vm363, %v344, 0
  %373 = vmatprep.subr.mxu0 0.0
  %374 = vmatpush1.msra.mxu0 %v338
  %375 = vmatprep.subr.mxu0 0.0
  %376 = vmatpush1.msra.mxu0 %v339
  %377 = vmatprep.subr.mxu0 0.0
  %378 = vmatpush1.msra.mxu0 %v340
  %379 = vmatprep.subr.mxu0 0.0
  %380 = vmatpush1.msra.mxu0 %v341
  %381 = vmatprep.subr.mxu0 0.0
  %382 = vmatpush1.msra.mxu0 0.0
  %383 = vmatprep.subr.mxu0 0.0
  %384 = vmatpush1.msra.mxu0 0.0
  %385 = vmatprep.subr.mxu0 0.0
  %386 = vmatpush1.msra.mxu0 0.0
  %387 = vmatprep.subr.mxu0 0.0
  %388 = vmatpush1.msra.mxu0 0.0
  %389 = vmatprep.subr.mxu0 0.0
  %390 = vmatpush1.msra.mxu0 0.0
  %391 = vmatprep.subr.mxu0 0.0
  %392 = vmatpush1.msra.mxu0 0.0
  %393 = vmatprep.subr.mxu0 0.0
  %394 = vmatpush1.msra.mxu0 0.0
  %395 = vmatprep.subr.mxu0 0.0
  %396 = vmatpush1.msra.mxu0 0.0
  %397 = vmatprep.subr.mxu0 0.0
  %398 = vmatpush1.msra.mxu0 0.0
  %399 = vmatprep.subr.mxu0 0.0
  %400 = vmatpush1.msra.mxu0 0.0
  %401 = vmatprep.subr.mxu0 0.0
  %402 = vmatpush1.msra.mxu0 0.0
  %403 = vmatprep.subr.mxu0 0.0
  %404 = vmatpush1.msra.mxu0 0.0
  %405 = vmatprep.subr.mxu0 0.0
  %406 = vmatpush1.msra.mxu0 0.0
  %407 = vmatprep.subr.mxu0 0.0
  %408 = vmatpush1.msra.mxu0 0.0
  %409 = vmatprep.subr.mxu0 0.0
  %410 = vmatpush1.msra.mxu0 0.0
  %411 = vmatprep.subr.mxu0 0.0
  %412 = vmatpush1.msra.mxu0 0.0
  %413 = vmatprep.subr.mxu0 0.0
  %414 = vmatpush1.msra.mxu0 0.0
  %415 = vmatprep.subr.mxu0 0.0
  %416 = vmatpush1.msra.mxu0 0.0
  %417 = vmatprep.subr.mxu0 0.0
  %418 = vmatpush1.msra.mxu0 0.0
  %419 = vmatprep.subr.mxu0 0.0
  %420 = vmatpush1.msra.mxu0 0.0
  %421 = vmatprep.subr.mxu0 0.0
  %422 = vmatpush1.msra.mxu0 0.0
  %423 = vmatprep.subr.mxu0 0.0
  %424 = vmatpush1.msra.mxu0 0.0
  %425 = vmatprep.subr.mxu0 0.0
  %426 = vmatpush1.msra.mxu0 0.0
  %427 = vmatprep.subr.mxu0 0.0
  %428 = vmatpush1.msra.mxu0 0.0
  %429 = vmatprep.subr.mxu0 0.0
  %430 = vmatpush1.msra.mxu0 0.0
  %431 = vmatprep.subr.mxu0 0.0
  %432 = vmatpush1.msra.mxu0 0.0
  %433 = vmatprep.subr.mxu0 0.0
  %434 = vmatpush1.msra.mxu0 0.0
  %435 = vmatprep.subr.mxu0 0.0
  %436 = vmatpush1.msra.mxu0 0.0
  %437 = vmatprep.mubr.f32.mxu0 0.0
  %438 = vmatmul.mubr.f32.gmra.mrb[0].mxu0 %v365
  %v439 = vpop.f32.mrb[0].mxu0
  %v440 = vadd.f32 %v351, %v439
  %v441 = vpop.f32.mrb[0].mxu0
  %442 = vmatprep.mubr.f32.mxu0 0.0
  %443 = vmatmul.mubr.f32.gmra.mrb[0].mxu0 %v368
  %v444 = vpop.f32.mrb[0].mxu0
  %v445 = vadd.f32 %v356, %v444
  %v446 = vpop.f32.mrb[0].mxu0
  %447 = vmatprep.mubr.f32.mxu0 0.0
  %448 = vmatmul.mubr.f32.gmra.mrb[0].mxu0 %v371
  %v449 = vpop.f32.mrb[0].mxu0
  %v450 = vadd.f32 %v361, %v449
  %v451 = vpop.f32.mrb[0].mxu0
  %452 = vdwg.mxu0
  %vm453 = vcmask 31744
  %454 = vst.msk [vmem:[%s9] sm:$0xff] %vm453, %v440
  %455 = vst.msk [vmem:[%s9 + $0x8] sm:$0xff] %vm453, %v445
  %vm456 = vcmask 27648
  %457 = vst.msk [vmem:[%s9 + $0x10] sm:$0xf] %vm456, %v450
  // Predicated region
  $region38: #{tpu_custom_call.1} parent=0 // pred_check
    _
  $region39: #{tpu_custom_call.1} parent=0 // pred_check_branch
    %459 = sbr.rel (0) target = $region41
  $region40: #{tpu_custom_call.1} parent=0 // pred_region
    _
  $region41: #{tpu_custom_call.1} parent=0 // pred_fallthru
    _
  // Predicated region
  $region42: #{tpu_custom_call.1} parent=0 // pred_check
    _
  $region43: #{tpu_custom_call.1} parent=0 // pred_check_branch
    %461 = sbr.rel (0) target = $region45
  $region44: #{tpu_custom_call.1} parent=0 // pred_region
    _
  $region45: #{tpu_custom_call.1} parent=0 // pred_fallthru
    _

</llo_original>
